<compile_context>
chip_gen: v7x
topology: tpu7x:2x2x1
jax: 0.10.0
libtpu: 0.0.40
codegen_flags: <defaults>
</compile_context>

<pallas_src>
import functools

import jax
import jax.numpy as jnp
from jax.experimental import pallas as pl
from jax.experimental.pallas import tpu as pltpu


def _round_up(x: int, m: int) -> int:
    return (x + m - 1) // m * m


def _row_align(dtype) -> int:
    """Native sublane packing: 8 rows for f32, 16 for bf16, 32 for int8/fp8."""
    return max(8, 32 // jnp.dtype(dtype).itemsize)


def _vmem_budget():
    """(tile-selection budget, physical VMEM capacity) in bytes, per chip."""
    try:
        cap = int(pltpu.get_tpu_info().vmem_capacity_bytes)
    except Exception:  # pragma: no cover - conservative fallback
        cap = 64 * 1024 * 1024
    if cap >= 96 * 1024 * 1024:          # v5e / v6e: 128 MiB physical VMEM
        budget = 88 * 1024 * 1024
    else:                                 # v7x: 64 MiB per TensorCore
        budget = int(cap * 0.65)
    return budget, cap


def _pick_tile_rows(n_rows, d_pad, h_pad, itemsize, row_align, budget, weight_buffers):
    """Largest row tile fitting the per-chip VMEM budget (weights counted
    `weight_buffers` times; f32 intermediates capped by 128-row sub-tiling)."""
    weight_bytes = weight_buffers * (2 * d_pad * h_pad + h_pad + d_pad) * itemsize
    tile = row_align
    for cand in (2048, 1024, 512, 256, 128, 64, 32, 16, 8):
        if cand % row_align:
            continue
        act_bytes = 2 * 2 * cand * d_pad * itemsize          # x + out tiles, double-buffered
        sub = 128 if cand % 128 == 0 else cand
        scratch_bytes = sub * (h_pad + d_pad) * 4             # live f32 intermediates
        if weight_bytes + act_bytes + scratch_bytes <= budget:
            tile = cand
            break
    n_round = _round_up(n_rows, row_align)
    if n_round > 128:                      # keep sub-tiling divisibility clean
        n_round = _round_up(n_rows, 128)
    return max(min(tile, n_round), row_align)


def _pick_tile_h(d_pad, h_pad, tile_rows, itemsize, budget):
    """H chunk size for the weight-streaming fallback (chunks double-buffered)."""
    for cand in (4096, 2048, 1024, 512, 256, 128):
        if cand > max(h_pad, 128):
            continue
        w_bytes = 2 * (2 * d_pad * cand + cand) * itemsize
        act_bytes = 2 * 2 * tile_rows * d_pad * itemsize
        scratch = tile_rows * d_pad * 4 + tile_rows * cand * 4
        if w_bytes + act_bytes + scratch <= budget:
            return cand
    return 128


# --------------------------------------------------------------------------- kernels
def _resident_kernel(tile_rows: int, sub_rows: int):
    """Weight-resident: y = GELU(x @ W1 + b1) @ W2 + b2, row-sub-tiled in-kernel."""
    n_sub = tile_rows // sub_rows

    def kernel(x_ref, w1_ref, b1_ref, w2_ref, b2_ref, o_ref):
        def compute(r0):
            x = x_ref[pl.ds(r0, sub_rows), :]                 # native dtype -> MXU
            h = jnp.dot(x, w1_ref[...], preferred_element_type=jnp.float32)
            h = jax.nn.gelu(h + b1_ref[...].astype(jnp.float32), approximate=True)
            y = jnp.dot(h.astype(w2_ref.dtype), w2_ref[...],
                        preferred_element_type=jnp.float32)
            o_ref[pl.ds(r0, sub_rows), :] = (
                y + b2_ref[...].astype(jnp.float32)).astype(o_ref.dtype)

        if n_sub == 1:
            compute(0)
        else:
            def body(s, carry):
                compute(pl.multiple_of(s * sub_rows, sub_rows))
                return carry
            jax.lax.fori_loop(0, n_sub, body, 0, unroll=n_sub <= 8)

    return kernel


def _hchunk_kernel(x_ref, w1_ref, b1_ref, w2_ref, b2_ref, o_ref, acc_ref):
    """Weight-streaming: accumulate GELU(x @ W1[:,k] + b1[k]) @ W2[k,:] over H chunks."""
    k = pl.program_id(1)

    @pl.when(k == 0)
    def _():
        acc_ref[...] = jnp.zeros_like(acc_ref)

    h = jnp.dot(x_ref[...], w1_ref[...], preferred_element_type=jnp.float32)
    h = jax.nn.gelu(h + b1_ref[...].astype(jnp.float32), approximate=True)
    acc_ref[...] += jnp.dot(h.astype(w2_ref.dtype), w2_ref[...],
                            preferred_element_type=jnp.float32)

    @pl.when(k == pl.num_programs(1) - 1)
    def _():
        o_ref[...] = (acc_ref[...]
                      + b2_ref[...].astype(jnp.float32)).astype(o_ref.dtype)


# --------------------------------------------------------------------------- launcher
@functools.partial(
    jax.jit,
    static_argnames=("tile_rows", "tile_h", "resident", "single_buffer", "vmem_limit"),
)
def _mlp_forward(x2d, w1, b1, w2, b2, *, tile_rows, tile_h, resident,
                 single_buffer, vmem_limit):
    n, d = x2d.shape
    d_pad, h_pad = w1.shape
    dtype = x2d.dtype
    itemsize = jnp.dtype(dtype).itemsize

    n_pad = _round_up(n, tile_rows)
    padded = (n_pad, d_pad) != (n, d)
    if padded:
        # Zero padding is algebraically inert (GELU(0)==0, padded W rows/cols are 0).
        x2d = jnp.pad(x2d, ((0, n_pad - n), (0, d_pad - d)))

    flops = 2 * n_pad * d_pad * h_pad * 2
    bytes_accessed = (x2d.size + w1.size + b1.size + w2.size + b2.size
                      + n_pad * d_pad) * itemsize
    cost = pl.CostEstimate(flops=flops, transcendentals=n_pad * h_pad,
                           bytes_accessed=bytes_accessed)
    compiler_params = pltpu.CompilerParams(
        dimension_semantics=("parallel",) if resident else ("parallel", "arbitrary"),
        vmem_limit_bytes=vmem_limit,
    )
    # Constant-index blocks need no revolving buffer -> single-buffer them.
    wmode = dict(pipeline_mode=pl.Buffered(1)) if single_buffer else {}

    if resident:
        sub_rows = 128 if tile_rows % 128 == 0 else tile_rows
        out = pl.pallas_call(
            _resident_kernel(tile_rows, sub_rows),
            out_shape=jax.ShapeDtypeStruct((n_pad, d_pad), dtype),
            grid_spec=pltpu.PrefetchScalarGridSpec(
                num_scalar_prefetch=0,
                grid=(n_pad // tile_rows,),
                in_specs=[
                    pl.BlockSpec((tile_rows, d_pad), lambda i: (i, 0)),       # x tile
                    pl.BlockSpec((d_pad, h_pad), lambda i: (0, 0), **wmode),  # W1
                    pl.BlockSpec((1, h_pad), lambda i: (0, 0), **wmode),      # b1
                    pl.BlockSpec((h_pad, d_pad), lambda i: (0, 0), **wmode),  # W2
                    pl.BlockSpec((1, d_pad), lambda i: (0, 0), **wmode),      # b2
                ],
                out_specs=pl.BlockSpec((tile_rows, d_pad), lambda i: (i, 0)),
            ),
            compiler_params=compiler_params,
            cost_estimate=cost,
        )(x2d, w1, b1, w2, b2)
    else:
        out = pl.pallas_call(
            _hchunk_kernel,
            out_shape=jax.ShapeDtypeStruct((n_pad, d_pad), dtype),
            grid_spec=pltpu.PrefetchScalarGridSpec(
                num_scalar_prefetch=0,
                grid=(n_pad // tile_rows, h_pad // tile_h),
                in_specs=[
                    pl.BlockSpec((tile_rows, d_pad), lambda i, k: (i, 0)),     # x tile
                    pl.BlockSpec((d_pad, tile_h), lambda i, k: (0, k)),        # W1 chunk
                    pl.BlockSpec((1, tile_h), lambda i, k: (0, k)),            # b1 chunk
                    pl.BlockSpec((tile_h, d_pad), lambda i, k: (k, 0)),        # W2 chunk
                    pl.BlockSpec((1, d_pad), lambda i, k: (0, 0), **wmode),    # b2
                ],
                out_specs=pl.BlockSpec((tile_rows, d_pad), lambda i, k: (i, 0)),
                scratch_shapes=[pltpu.VMEM((tile_rows, d_pad), jnp.float32)],
            ),
            compiler_params=compiler_params,
            cost_estimate=cost,
        )(x2d, w1, b1, w2, b2)

    if padded:
        out = out[:n, :d]
    return out


# --------------------------------------------------------------------------- module
class Deterministic:
    """JAX/Pallas port of xformers' Deterministic wrapper.

    forward(*args, record_rng=False, set_rng=False) calls the wrapped net.
    record_rng stores the current RNG "state" (a seed); set_rng replays it so a
    stochastic net would reproduce its forward exactly.  The inner net here is
    deterministic, so replay produces bit-identical results.
    """

    def __init__(self, d_model: int, d_hidden: int, dtype=jnp.float32,
                 _force_chunked: bool = False, _force_tile_h=None):
        k = jax.random.PRNGKey(42)
        k1, k2 = jax.random.split(k)
        w1 = (jax.random.normal(k1, (d_model, d_hidden)) * 0.02).astype(dtype)
        b1 = jnp.zeros((1, d_hidden), dtype)
        w2 = (jax.random.normal(k2, (d_hidden, d_model)) * 0.02).astype(dtype)
        b2 = jnp.zeros((1, d_model), dtype)

        self.d_model, self.d_hidden, self.dtype = d_model, d_hidden, dtype
        itemsize = jnp.dtype(dtype).itemsize
        self._row_align = _row_align(dtype)
        self._budget, self._vmem_cap = _vmem_budget()

        d_pad = _round_up(d_model, 128)
        h_pad = _round_up(d_hidden, 128)

        # Weight-resident strategy if one copy of the weights fits comfortably;
        # otherwise stream W1/W2 chunks over an "arbitrary" H grid axis.
        weight_bytes = (2 * d_pad * h_pad + h_pad + d_pad) * itemsize
        self._resident = (not _force_chunked) and weight_bytes <= int(0.6 * self._budget)
        if self._resident:
            self._tile_h = h_pad
        else:
            tile_h = _force_tile_h or _pick_tile_h(d_pad, h_pad, 256, itemsize,
                                                   self._budget)
            h_pad = _round_up(h_pad, tile_h)
            self._tile_h = tile_h

        # Pad parameters ONCE at init (lane-dense multiples of 128) so per-call
        # forwards do not re-pad the weights (extra HBM pass removed).
        self.w1 = jnp.pad(w1, ((0, d_pad - d_model), (0, h_pad - d_hidden)))
        self.b1 = jnp.pad(b1, ((0, 0), (0, h_pad - d_hidden)))
        self.w2 = jnp.pad(w2, ((0, h_pad - d_hidden), (0, d_pad - d_model)))
        self.b2 = jnp.pad(b2, ((0, 0), (0, d_pad - d_model)))
        self._d_pad, self._h_pad = d_pad, h_pad

        self._single_buffer_ok = None      # probed on first call
        # RNG bookkeeping (analogue of cpu_state / gpu_states)
        self._rng_seed = 0
        self._next_seed = 0
        self.wrap_inputs = False

    # ---------------------------------------------------------------- config
    def _launch_config(self, n_rows: int, single_buffer: bool):
        itemsize = jnp.dtype(self.dtype).itemsize
        d_pad, h_pad = self._d_pad, self._h_pad
        budget, cap = self._budget, self._vmem_cap
        wbuf = 1 if single_buffer else 2

        if self._resident:
            tile_rows = _pick_tile_rows(n_rows, d_pad, h_pad, itemsize,
                                        self._row_align, budget, wbuf)
            sub = 128 if tile_rows % 128 == 0 else tile_rows
            need = (wbuf * (2 * d_pad * h_pad + h_pad + d_pad) * itemsize
                    + 4 * tile_rows * d_pad * itemsize
                    + sub * (h_pad + d_pad) * 4)
            tile_h = h_pad
        else:
            tile_h = self._tile_h
            n_round = _round_up(n_rows, self._row_align)
            if n_round > 128:
                n_round = _round_up(n_rows, 128)
            tile_rows = min(256, n_round)
            need = (2 * (2 * d_pad * tile_h + tile_h) * itemsize
                    + wbuf * d_pad * itemsize
                    + 4 * tile_rows * d_pad * itemsize
                    + tile_rows * d_pad * 4
                    + tile_rows * tile_h * 4)
        vmem_limit = int(min(max(need * 3 // 2, 32 * 1024 * 1024), int(cap * 0.85)))
        return tile_rows, tile_h, vmem_limit

    def _run(self, x2d, single_buffer: bool):
        tile_rows, tile_h, vmem_limit = self._launch_config(x2d.shape[0], single_buffer)
        return _mlp_forward(x2d, self.w1, self.b1, self.w2, self.b2,
                            tile_rows=tile_rows, tile_h=tile_h,
                            resident=self._resident, single_buffer=single_buffer,
                            vmem_limit=vmem_limit)

    def _net(self, x):
        b, s, d = x.shape
        x2d = x.reshape(b * s, d)
        if self._single_buffer_ok is None:
            try:
                y = jax.block_until_ready(self._run(x2d, single_buffer=True))
                self._single_buffer_ok = True
            except Exception:
                # TODO(synk): pl.Buffered(1) single-buffering rejected by this jax
                # build; fall back to default double-buffered weight blocks.
                self._single_buffer_ok = False
                y = self._run(x2d, single_buffer=False)
        else:
            y = self._run(x2d, single_buffer=self._single_buffer_ok)
        return y.reshape(b, s, d)

    # ---------------------------------------------------------------- API parity
    def record_rng(self, *args):
        self._rng_seed = self._next_seed

    def forward(self, *args, record_rng: bool = False, set_rng: bool = False):
        if record_rng:
            self.record_rng(*args)
        if not set_rng:
            return self._net(*args)
        # Replay path: would fork + restore RNG state around the net call.
        # Inner net has no randomness, so this is identical to the plain call.
        _replayed_seed = self._rng_seed  # noqa: F841 (kept for parity)
        return self._net(*args)

    __call__ = forward


if __name__ == "__main__":
    B, S, D, H = 2, 8, 32, 64
    key = jax.random.PRNGKey(0)
    x = jax.random.normal(key, (B, S, D), jnp.float32)

    module = Deterministic(d_model=D, d_hidden=H)

    # Normal forward (record RNG like the reversible wrapper does on fwd).
    y = jax.block_until_ready(module(x, record_rng=True))
    # Replayed forward (as used during reversible backward recompute).
    y_replay = jax.block_until_ready(module(x, set_rng=True))

    # Pure-JAX reference (same GELU flavour; padded weights sliced back to raw).
    def ref(xv, m, d, h):
        w1, b1 = m.w1[:d, :h], m.b1[0, :h]
        w2, b2 = m.w2[:h, :d], m.b2[0, :d]
        hh = jax.nn.gelu(xv @ w1 + b1, approximate=True)
        return hh @ w2 + b2

    ref_y = ref(x, module, D, H)
    assert y.shape == (B, S, D) and y.dtype == x.dtype
    assert jnp.allclose(y, ref_y, atol=1e-4, rtol=1e-4)
    assert jnp.allclose(y, y_replay)  # deterministic replay matches

    # Exercise the in-kernel row sub-tiling path (row tile > 128 rows).
    x_big = jax.random.normal(jax.random.PRNGKey(1), (2, 80, D), jnp.float32)
    y_big = jax.block_until_ready(module(x_big))
    assert jnp.allclose(y_big, ref(x_big, module, D, H), atol=1e-4, rtol=1e-4)

    # Exercise the H-chunked weight-streaming fallback (2 chunks over H).
    module_c = Deterministic(d_model=D, d_hidden=256,
                             _force_chunked=True, _force_tile_h=128)
    y_c = jax.block_until_ready(module_c(x))
    assert jnp.allclose(y_c, ref(x, module_c, D, 256), atol=1e-4, rtol=1e-4)

    print("KERNEL_OK")
</pallas_src>

<mosaic_0001>
module attributes {stable_mosaic.version = 11 : i64} {
  func.func @kernel(%arg0: i32, %arg1: memref<16x128xf32, #tpu.memory_space<vmem>>, %arg2: memref<128x128xf32, #tpu.memory_space<vmem>>, %arg3: memref<1x128xf32, #tpu.memory_space<vmem>>, %arg4: memref<128x128xf32, #tpu.memory_space<vmem>>, %arg5: memref<1x128xf32, #tpu.memory_space<vmem>>, %arg6: memref<16x128xf32, #tpu.memory_space<vmem>>) attributes {dimension_semantics = [#tpu.dimension_semantics<parallel>], iteration_bounds = array<i64: 1>, scalar_prefetch = 0 : i64, scratch_operands = 0 : i64, tpu.core_type = #tpu.core_type<tc>, window_params = [{transform_indices = @transform_0, window_bounds = array<i64: 16, 128>}, {pipeline_mode = #tpu.pipeline_mode<synchronous>, transform_indices = @transform_1, window_bounds = array<i64: 128, 128>}, {pipeline_mode = #tpu.pipeline_mode<synchronous>, transform_indices = @transform_2, window_bounds = array<i64: 1, 128>}, {pipeline_mode = #tpu.pipeline_mode<synchronous>, transform_indices = @transform_3, window_bounds = array<i64: 128, 128>}, {pipeline_mode = #tpu.pipeline_mode<synchronous>, transform_indices = @transform_4, window_bounds = array<i64: 1, 128>}, {transform_indices = @transform_5, window_bounds = array<i64: 16, 128>}]} {
    %c0 = arith.constant 0 : index
    %c0_0 = arith.constant 0 : index
    %0 = vector.load %arg1[%c0, %c0_0] : memref<16x128xf32, #tpu.memory_space<vmem>>, vector<16x128xf32>
    %c0_1 = arith.constant 0 : index
    %c0_2 = arith.constant 0 : index
    %1 = vector.load %arg2[%c0_1, %c0_2] : memref<128x128xf32, #tpu.memory_space<vmem>>, vector<128x128xf32>
    %cst = arith.constant dense<0.000000e+00> : vector<16x128xf32>
    %2 = tpu.matmul %0, %1, %cst {dimension_numbers = #tpu.dot_dimension_numbers<[1], [0], [0], [1], [0, 0, 1, 1], [], []>} : vector<16x128xf32>, vector<128x128xf32>, vector<16x128xf32> -> vector<16x128xf32>
    %c0_3 = arith.constant 0 : index
    %c0_4 = arith.constant 0 : index
    %3 = vector.load %arg3[%c0_3, %c0_4] : memref<1x128xf32, #tpu.memory_space<vmem>>, vector<1x128xf32>
    %4 = vector.broadcast %3 : vector<1x128xf32> to vector<16x128xf32>
    %5 = arith.addf %2, %4 : vector<16x128xf32>
    %6 = arith.mulf %5, %5 : vector<16x128xf32>
    %7 = arith.mulf %5, %6 : vector<16x128xf32>
    %cst_5 = arith.constant 4.471500e-02 : f32
    %8 = vector.broadcast %cst_5 : f32 to vector<16x128xf32>
    %9 = arith.mulf %8, %7 : vector<16x128xf32>
    %10 = arith.addf %5, %9 : vector<16x128xf32>
    %cst_6 = arith.constant 0.797884583 : f32
    %11 = vector.broadcast %cst_6 : f32 to vector<16x128xf32>
    %12 = arith.mulf %11, %10 : vector<16x128xf32>
    %13 = math.tanh %12 : vector<16x128xf32>
    %cst_7 = arith.constant 1.000000e+00 : f32
    %14 = vector.broadcast %cst_7 : f32 to vector<16x128xf32>
    %15 = arith.addf %14, %13 : vector<16x128xf32>
    %cst_8 = arith.constant 5.000000e-01 : f32
    %16 = vector.broadcast %cst_8 : f32 to vector<16x128xf32>
    %17 = arith.mulf %16, %15 : vector<16x128xf32>
    %18 = arith.mulf %5, %17 : vector<16x128xf32>
    %c0_9 = arith.constant 0 : index
    %c0_10 = arith.constant 0 : index
    %19 = vector.load %arg4[%c0_9, %c0_10] : memref<128x128xf32, #tpu.memory_space<vmem>>, vector<128x128xf32>
    %cst_11 = arith.constant dense<0.000000e+00> : vector<16x128xf32>
    %20 = tpu.matmul %18, %19, %cst_11 {dimension_numbers = #tpu.dot_dimension_numbers<[1], [0], [0], [1], [0, 0, 1, 1], [], []>} : vector<16x128xf32>, vector<128x128xf32>, vector<16x128xf32> -> vector<16x128xf32>
    %c0_12 = arith.constant 0 : index
    %c0_13 = arith.constant 0 : index
    %21 = vector.load %arg5[%c0_12, %c0_13] : memref<1x128xf32, #tpu.memory_space<vmem>>, vector<1x128xf32>
    %22 = vector.broadcast %21 : vector<1x128xf32> to vector<16x128xf32>
    %23 = arith.addf %20, %22 : vector<16x128xf32>
    %c0_14 = arith.constant 0 : index
    %c0_15 = arith.constant 0 : index
    %24 = vector.load %arg6[%c0_14, %c0_15] : memref<16x128xf32, #tpu.memory_space<vmem>>, vector<16x128xf32>
    tpu.vector_store %arg6[%c0_14, %c0_15], %23 {strides = array<i32>} : memref<16x128xf32, #tpu.memory_space<vmem>>, vector<16x128xf32>,
    return
  }
  func.func @transform_0(%arg0: i32) -> (i32, i32) {
    %c0_i32 = arith.constant 0 : i32
    %c0_i32_0 = arith.constant 0 : i32
    return %arg0, %c0_i32 : i32, i32
  }
  func.func @transform_1(%arg0: i32) -> (i32, i32) {
    %c0_i32 = arith.constant 0 : i32
    %c0_i32_0 = arith.constant 0 : i32
    %c0_i32_1 = arith.constant 0 : i32
    return %c0_i32, %c0_i32_0 : i32, i32
  }
  func.func @transform_2(%arg0: i32) -> (i32, i32) {
    %c0_i32 = arith.constant 0 : i32
    %c0_i32_0 = arith.constant 0 : i32
    %c0_i32_1 = arith.constant 0 : i32
    return %c0_i32, %c0_i32_0 : i32, i32
  }
  func.func @transform_3(%arg0: i32) -> (i32, i32) {
    %c0_i32 = arith.constant 0 : i32
    %c0_i32_0 = arith.constant 0 : i32
    %c0_i32_1 = arith.constant 0 : i32
    return %c0_i32, %c0_i32_0 : i32, i32
  }
  func.func @transform_4(%arg0: i32) -> (i32, i32) {
    %c0_i32 = arith.constant 0 : i32
    %c0_i32_0 = arith.constant 0 : i32
    %c0_i32_1 = arith.constant 0 : i32
    return %c0_i32, %c0_i32_0 : i32, i32
  }
  func.func @transform_5(%arg0: i32) -> (i32, i32) {
    %c0_i32 = arith.constant 0 : i32
    %c0_i32_0 = arith.constant 0 : i32
    return %arg0, %c0_i32 : i32, i32
  }
}

module attributes {stable_mosaic.version = 11 : i64} {
  func.func @kernel(%arg0: i32, %arg1: memref<16x128xf32, #tpu.memory_space<vmem>>, %arg2: memref<128x128xf32, #tpu.memory_space<vmem>>, %arg3: memref<1x128xf32, #tpu.memory_space<vmem>>, %arg4: memref<128x128xf32, #tpu.memory_space<vmem>>, %arg5: memref<1x128xf32, #tpu.memory_space<vmem>>, %arg6: memref<16x128xf32, #tpu.memory_space<vmem>>) attributes {dimension_semantics = [#tpu.dimension_semantics<parallel>], iteration_bounds = array<i64: 1>, scalar_prefetch = 0 : i64, scratch_operands = 0 : i64, tpu.core_type = #tpu.core_type<tc>, window_params = [{transform_indices = @transform_0, window_bounds = array<i64: 16, 128>}, {pipeline_mode = #tpu.pipeline_mode<synchronous>, transform_indices = @transform_1, window_bounds = array<i64: 128, 128>}, {pipeline_mode = #tpu.pipeline_mode<synchronous>, transform_indices = @transform_2, window_bounds = array<i64: 1, 128>}, {pipeline_mode = #tpu.pipeline_mode<synchronous>, transform_indices = @transform_3, window_bounds = array<i64: 128, 128>}, {pipeline_mode = #tpu.pipeline_mode<synchronous>, transform_indices = @transform_4, window_bounds = array<i64: 1, 128>}, {transform_indices = @transform_5, window_bounds = array<i64: 16, 128>}]} {
    %c0 = arith.constant 0 : index
    %c0_0 = arith.constant 0 : index
    %0 = vector.load %arg1[%c0, %c0_0] : memref<16x128xf32, #tpu.memory_space<vmem>>, vector<16x128xf32>
    %c0_1 = arith.constant 0 : index
    %c0_2 = arith.constant 0 : index
    %1 = vector.load %arg2[%c0_1, %c0_2] : memref<128x128xf32, #tpu.memory_space<vmem>>, vector<128x128xf32>
    %cst = arith.constant dense<0.000000e+00> : vector<16x128xf32>
    %2 = tpu.matmul %0, %1, %cst {dimension_numbers = #tpu.dot_dimension_numbers<[1], [0], [0], [1], [0, 0, 1, 1], [], []>} : vector<16x128xf32>, vector<128x128xf32>, vector<16x128xf32> -> vector<16x128xf32>
    %c0_3 = arith.constant 0 : index
    %c0_4 = arith.constant 0 : index
    %3 = vector.load %arg3[%c0_3, %c0_4] : memref<1x128xf32, #tpu.memory_space<vmem>>, vector<1x128xf32>
    %4 = vector.broadcast %3 : vector<1x128xf32> to vector<16x128xf32>
    %5 = arith.addf %2, %4 : vector<16x128xf32>
    %6 = arith.mulf %5, %5 : vector<16x128xf32>
    %7 = arith.mulf %5, %6 : vector<16x128xf32>
    %cst_5 = arith.constant 4.471500e-02 : f32
    %8 = vector.broadcast %cst_5 : f32 to vector<16x128xf32>
    %9 = arith.mulf %8, %7 : vector<16x128xf32>
    %10 = arith.addf %5, %9 : vector<16x128xf32>
    %cst_6 = arith.constant 0.797884583 : f32
    %11 = vector.broadcast %cst_6 : f32 to vector<16x128xf32>
    %12 = arith.mulf %11, %10 : vector<16x128xf32>
    %13 = math.tanh %12 : vector<16x128xf32>
    %cst_7 = arith.constant 1.000000e+00 : f32
    %14 = vector.broadcast %cst_7 : f32 to vector<16x128xf32>
    %15 = arith.addf %14, %13 : vector<16x128xf32>
    %cst_8 = arith.constant 5.000000e-01 : f32
    %16 = vector.broadcast %cst_8 : f32 to vector<16x128xf32>
    %17 = arith.mulf %16, %15 : vector<16x128xf32>
    %18 = arith.mulf %5, %17 : vector<16x128xf32>
    %c0_9 = arith.constant 0 : index
    %c0_10 = arith.constant 0 : index
    %19 = vector.load %arg4[%c0_9, %c0_10] : memref<128x128xf32, #tpu.memory_space<vmem>>, vector<128x128xf32>
    %cst_11 = arith.constant dense<0.000000e+00> : vector<16x128xf32>
    %20 = tpu.matmul %18, %19, %cst_11 {dimension_numbers = #tpu.dot_dimension_numbers<[1], [0], [0], [1], [0, 0, 1, 1], [], []>} : vector<16x128xf32>, vector<128x128xf32>, vector<16x128xf32> -> vector<16x128xf32>
    %c0_12 = arith.constant 0 : index
    %c0_13 = arith.constant 0 : index
    %21 = vector.load %arg5[%c0_12, %c0_13] : memref<1x128xf32, #tpu.memory_space<vmem>>, vector<1x128xf32>
    %22 = vector.broadcast %21 : vector<1x128xf32> to vector<16x128xf32>
    %23 = arith.addf %20, %22 : vector<16x128xf32>
    %c0_14 = arith.constant 0 : index
    %c0_15 = arith.constant 0 : index
    %24 = vector.load %arg6[%c0_14, %c0_15] : memref<16x128xf32, #tpu.memory_space<vmem>>, vector<16x128xf32>
    tpu.vector_store %arg6[%c0_14, %c0_15], %23 {strides = array<i32>} : memref<16x128xf32, #tpu.memory_space<vmem>>, vector<16x128xf32>,
    return
  }
  func.func @transform_0(%arg0: i32) -> (i32, i32) {
    %c0_i32 = arith.constant 0 : i32
    %c0_i32_0 = arith.constant 0 : i32
    return %arg0, %c0_i32 : i32, i32
  }
  func.func @transform_1(%arg0: i32) -> (i32, i32) {
    %c0_i32 = arith.constant 0 : i32
    %c0_i32_0 = arith.constant 0 : i32
    %c0_i32_1 = arith.constant 0 : i32
    return %c0_i32, %c0_i32_0 : i32, i32
  }
  func.func @transform_2(%arg0: i32) -> (i32, i32) {
    %c0_i32 = arith.constant 0 : i32
    %c0_i32_0 = arith.constant 0 : i32
    %c0_i32_1 = arith.constant 0 : i32
    return %c0_i32, %c0_i32_0 : i32, i32
  }
  func.func @transform_3(%arg0: i32) -> (i32, i32) {
    %c0_i32 = arith.constant 0 : i32
    %c0_i32_0 = arith.constant 0 : i32
    %c0_i32_1 = arith.constant 0 : i32
    return %c0_i32, %c0_i32_0 : i32, i32
  }
  func.func @transform_4(%arg0: i32) -> (i32, i32) {
    %c0_i32 = arith.constant 0 : i32
    %c0_i32_0 = arith.constant 0 : i32
    %c0_i32_1 = arith.constant 0 : i32
    return %c0_i32, %c0_i32_0 : i32, i32
  }
  func.func @transform_5(%arg0: i32) -> (i32, i32) {
    %c0_i32 = arith.constant 0 : i32
    %c0_i32_0 = arith.constant 0 : i32
    return %arg0, %c0_i32 : i32, i32
  }
}

</mosaic_0001>

<llo_original>
// kernel: _mlp_forward.1
$region0: #{_mlp_forward.1}
  #allocation0 [shape = 'u32[]', space=smem, size = 0x4, offset = 0x4, fixed_abs, tag = 'smem constant byte address 0x4 - core index']
  #allocation1 [shape = 'u32[144,128]{1,0:T(1,128)}', space=vmem, size = 0x12000, scoped, tag = 'internal scratch']
  %s0 = inlined_call_operand.vmem [shape: f32[16,128], index: 0, kind: input, shape index: {}]
  %s1 = inlined_call_operand.hbm [shape: f32[128,128], index: 1, kind: input, shape index: {}]
  %s2 = inlined_call_operand.vmem [shape: f32[1,128], index: 2, kind: input, shape index: {}]
  %s3 = inlined_call_operand.hbm [shape: f32[128,128], index: 3, kind: input, shape index: {}]
  %s4 = inlined_call_operand.vmem [shape: f32[1,128], index: 4, kind: input, shape index: {}]
  %s5 = inlined_call_operand.hbm [shape: f32[16,128], index: 5, kind: output, shape index: {}]
  %s6 = sld [smem:[#allocation0]]
  $region38: #{_mlp_forward.1} parent=0
    _
  %s8 = ssub.s32 1, %s6
  %s9 = scalar_select 0, %s8, %s6
  $region1: #{_mlp_forward.1} parent=0
    #allocation2 [shape = 'u8[65536]{0}', space=vmem, size = 0x10000, scoped, tag = 'input window, operand 1, single buffered']
    #allocation3 [shape = 's32[1]{0}', space=sflag, size = 0x4, scoped, tag = 'scoped memory for _mlp_forward.1']
    #allocation4 [shape = 's32[1]{0}', space=sflag, size = 0x4, scoped, tag = 'scoped memory for _mlp_forward.1']
    #allocation5 [shape = 'u8[65536]{0}', space=vmem, size = 0x10000, scoped, tag = 'input window, operand 3, single buffered']
    #allocation6 [shape = 's32[1]{0}', space=sflag, size = 0x4, scoped, tag = 'scoped memory for _mlp_forward.1']
    #allocation7 [shape = 'u8[8192]{0}', space=vmem, size = 0x2000, scoped, tag = 'output window, operand 0, single buffered']
    %10 = vsyncpa [#allocation3], 0
    %11 = vsyncpa [#allocation6], 0
    %12 = vsyncpa [#allocation4], 0
    // Predicated region
    $region2: #{_mlp_forward.1} parent=1 // pred_check
      _
    $region3: #{_mlp_forward.1} parent=1 // pred_check_branch
      %14 = sbr.rel (0) target = $region5
    $region4: #{_mlp_forward.1} parent=1 // pred_region
      _
    $region5: #{_mlp_forward.1} parent=1 // pred_fallthru
      _
    // Predicated region
    $region6: #{_mlp_forward.1} parent=1 // pred_check
      _
    $region7: #{_mlp_forward.1} parent=1 // pred_check_branch
      %16 = sbr.rel (0) target = $region9
    $region8: #{_mlp_forward.1} parent=1 // pred_region
      %s18 = ssub.s32 2048, 2048
      %19 = vsyncadd [#allocation3], %s18
      %s20 = sshll.u32 [#allocation2], 4
      %s21 = int_to_ptr.vmem [resolvable:$true] %s20
      %26 = dma.hbm_to_vmem [thread:$0]  %s1, 2048, %s21, [#allocation3], 128, 128, 8
    $region9: #{_mlp_forward.1} parent=1 // pred_fallthru
      _
    // Predicated region
    $region10: #{_mlp_forward.1} parent=1 // pred_check
      _
    $region11: #{_mlp_forward.1} parent=1 // pred_check_branch
      %28 = sbr.rel (0) target = $region13
    $region12: #{_mlp_forward.1} parent=1 // pred_region
      _
    $region13: #{_mlp_forward.1} parent=1 // pred_fallthru
      _
    // Predicated region
    $region14: #{_mlp_forward.1} parent=1 // pred_check
      _
    $region15: #{_mlp_forward.1} parent=1 // pred_check_branch
      %30 = sbr.rel (0) target = $region17
    $region16: #{_mlp_forward.1} parent=1 // pred_region
      %s32 = ssub.s32 2048, 2048
      %33 = vsyncadd [#allocation6], %s32
      %s34 = sshll.u32 [#allocation5], 4
      %s35 = int_to_ptr.vmem [resolvable:$true] %s34
      %40 = dma.hbm_to_vmem [thread:$0]  %s3, 2048, %s35, [#allocation6], 128, 128, 8
    $region17: #{_mlp_forward.1} parent=1 // pred_fallthru
      _
    // Predicated region
    $region18: #{_mlp_forward.1} parent=1 // pred_check
      _
    $region19: #{_mlp_forward.1} parent=1 // pred_check_branch
      %42 = sbr.rel (0) target = $region21
    $region20: #{_mlp_forward.1} parent=1 // pred_region
      _
    $region21: #{_mlp_forward.1} parent=1 // pred_fallthru
      _
    // Predicated region
    $region22: #{_mlp_forward.1} parent=1 // pred_check
      _
    $region23: #{_mlp_forward.1} parent=1 // pred_check_branch
      %44 = sbr.rel (0) target = $region25
    $region24: #{_mlp_forward.1} parent=1 // pred_region
      %45 = dma.done [#allocation3], 2048
    $region25: #{_mlp_forward.1} parent=1 // pred_fallthru
      _
    // Predicated region
    $region26: #{_mlp_forward.1} parent=1 // pred_check
      _
    $region27: #{_mlp_forward.1} parent=1 // pred_check_branch
      %47 = sbr.rel (0) target = $region29
    $region28: #{_mlp_forward.1} parent=1 // pred_region
      %48 = dma.done [#allocation6], 2048
    $region29: #{_mlp_forward.1} parent=1 // pred_fallthru
      _
    %v49 = vld [vmem:[%s0] sm:$0xff]
    %v50 = vld [vmem:[%s0 + $0x8] sm:$0xff]
    %v51 = vld [vmem:[#allocation2] sm:$0xff]
    %v52 = vld [vmem:[#allocation2 + $0x8] sm:$0xff]
    %v53 = vld [vmem:[#allocation2 + $0x10] sm:$0xff]
    %v54 = vld [vmem:[#allocation2 + $0x18] sm:$0xff]
    %v55 = vld [vmem:[#allocation2 + $0x20] sm:$0xff]
    %v56 = vld [vmem:[#allocation2 + $0x28] sm:$0xff]
    %v57 = vld [vmem:[#allocation2 + $0x30] sm:$0xff]
    %v58 = vld [vmem:[#allocation2 + $0x38] sm:$0xff]
    %v59 = vld [vmem:[#allocation2 + $0x40] sm:$0xff]
    %v60 = vld [vmem:[#allocation2 + $0x48] sm:$0xff]
    %v61 = vld [vmem:[#allocation2 + $0x50] sm:$0xff]
    %v62 = vld [vmem:[#allocation2 + $0x58] sm:$0xff]
    %v63 = vld [vmem:[#allocation2 + $0x60] sm:$0xff]
    %v64 = vld [vmem:[#allocation2 + $0x68] sm:$0xff]
    %v65 = vld [vmem:[#allocation2 + $0x70] sm:$0xff]
    %v66 = vld [vmem:[#allocation2 + $0x78] sm:$0xff]
    %v67 = vld [vmem:[%s2] sm:$0x1]
    %v69 = vlaneseq
    %v70 = vshrl.u32 %v69, 7
    %v71 = vsub.s32 0, %v70
    %v72 = vrot.slane %v67, %v71
    %74 = vmatprep.subr.mxu0 0.0
    %75 = vmatpush1.msra.mxu0 %v51
    %76 = vmatprep.subr.mxu0 0.0
    %77 = vmatpush1.msra.mxu0 %v52
    %78 = vmatprep.subr.mxu0 0.0
    %79 = vmatpush1.msra.mxu0 %v53
    %80 = vmatprep.subr.mxu0 0.0
    %81 = vmatpush1.msra.mxu0 %v54
    %82 = vmatprep.subr.mxu0 0.0
    %83 = vmatpush1.msra.mxu0 %v55
    %84 = vmatprep.subr.mxu0 0.0
    %85 = vmatpush1.msra.mxu0 %v56
    %86 = vmatprep.subr.mxu0 0.0
    %87 = vmatpush1.msra.mxu0 %v57
    %88 = vmatprep.subr.mxu0 0.0
    %89 = vmatpush1.msra.mxu0 %v58
    %90 = vmatprep.subr.mxu0 0.0
    %91 = vmatpush1.msra.mxu0 %v59
    %92 = vmatprep.subr.mxu0 0.0
    %93 = vmatpush1.msra.mxu0 %v60
    %94 = vmatprep.subr.mxu0 0.0
    %95 = vmatpush1.msra.mxu0 %v61
    %96 = vmatprep.subr.mxu0 0.0
    %97 = vmatpush1.msra.mxu0 %v62
    %98 = vmatprep.subr.mxu0 0.0
    %99 = vmatpush1.msra.mxu0 %v63
    %100 = vmatprep.subr.mxu0 0.0
    %101 = vmatpush1.msra.mxu0 %v64
    %102 = vmatprep.subr.mxu0 0.0
    %103 = vmatpush1.msra.mxu0 %v65
    %104 = vmatprep.subr.mxu0 0.0
    %105 = vmatpush1.msra.mxu0 %v66
    %106 = vmatprep.subr.mxu0 0.0
    %107 = vmatpush1.msra.mxu0 0.0
    %108 = vmatprep.subr.mxu0 0.0
    %109 = vmatpush1.msra.mxu0 0.0
    %110 = vmatprep.subr.mxu0 0.0
    %111 = vmatpush1.msra.mxu0 0.0
    %112 = vmatprep.subr.mxu0 0.0
    %113 = vmatpush1.msra.mxu0 0.0
    %114 = vmatprep.subr.mxu0 0.0
    %115 = vmatpush1.msra.mxu0 0.0
    %116 = vmatprep.subr.mxu0 0.0
    %117 = vmatpush1.msra.mxu0 0.0
    %118 = vmatprep.subr.mxu0 0.0
    %119 = vmatpush1.msra.mxu0 0.0
    %120 = vmatprep.subr.mxu0 0.0
    %121 = vmatpush1.msra.mxu0 0.0
    %122 = vmatprep.subr.mxu0 0.0
    %123 = vmatpush1.msra.mxu0 0.0
    %124 = vmatprep.subr.mxu0 0.0
    %125 = vmatpush1.msra.mxu0 0.0
    %126 = vmatprep.subr.mxu0 0.0
    %127 = vmatpush1.msra.mxu0 0.0
    %128 = vmatprep.subr.mxu0 0.0
    %129 = vmatpush1.msra.mxu0 0.0
    %130 = vmatprep.subr.mxu0 0.0
    %131 = vmatpush1.msra.mxu0 0.0
    %132 = vmatprep.subr.mxu0 0.0
    %133 = vmatpush1.msra.mxu0 0.0
    %134 = vmatprep.subr.mxu0 0.0
    %135 = vmatpush1.msra.mxu0 0.0
    %136 = vmatprep.subr.mxu0 0.0
    %137 = vmatpush1.msra.mxu0 0.0
    %138 = vmatprep.mubr.f32.mxu0 0.0
    %139 = vmatmul.mubr.f32.gmra.mrb[0].mxu0 %v49
    %v140 = vpop.f32.mrb[0].mxu0
    %v141 = vadd.f32 %v72, %v140
    %v142 = vpop.f32.mrb[0].mxu0
    %143 = vmatprep.mubr.f32.mxu0 0.0
    %144 = vmatmul.mubr.f32.gmra.mrb[0].mxu0 %v50
    %v145 = vpop.f32.mrb[0].mxu0
    %v146 = vadd.f32 %v72, %v145
    %v147 = vpop.f32.mrb[0].mxu0
    %148 = vdwg.mxu0
    %v149 = vmul.f32 %v141, %v141
    %v150 = vmul.f32 %v146, %v146
    %v151 = vmul.f32 %v141, %v149
    %v152 = vmul.f32 %v146, %v150
    %v153 = vmul.f32 %v151, 0.044715
    %v154 = vmul.f32 %v152, 0.044715
    %v155 = vadd.f32 %v141, %v153
    %v156 = vadd.f32 %v146, %v154
    %v157 = vmul.f32 %v155, 0.7978846
    %v158 = vmul.f32 %v156, 0.7978846
    %v159 = vtanh.pop %v157
    %v160 = vtanh.pop %v158
    %v161 = vadd.f32 %v159, 1.0
    %v162 = vadd.f32 %v160, 1.0
    %v163 = vmul.f32 %v161, 0.5
    %v164 = vmul.f32 %v162, 0.5
    %v165 = vmul.f32 %v141, %v163
    %v166 = vmul.f32 %v146, %v164
    %v167 = vld [vmem:[#allocation5] sm:$0xff]
    %v168 = vld [vmem:[#allocation5 + $0x8] sm:$0xff]
    %v169 = vld [vmem:[#allocation5 + $0x10] sm:$0xff]
    %v170 = vld [vmem:[#allocation5 + $0x18] sm:$0xff]
    %v171 = vld [vmem:[#allocation5 + $0x20] sm:$0xff]
    %v172 = vld [vmem:[#allocation5 + $0x28] sm:$0xff]
    %v173 = vld [vmem:[#allocation5 + $0x30] sm:$0xff]
    %v174 = vld [vmem:[#allocation5 + $0x38] sm:$0xff]
    %v175 = vld [vmem:[#allocation5 + $0x40] sm:$0xff]
    %v176 = vld [vmem:[#allocation5 + $0x48] sm:$0xff]
    %v177 = vld [vmem:[#allocation5 + $0x50] sm:$0xff]
    %v178 = vld [vmem:[#allocation5 + $0x58] sm:$0xff]
    %v179 = vld [vmem:[#allocation5 + $0x60] sm:$0xff]
    %v180 = vld [vmem:[#allocation5 + $0x68] sm:$0xff]
    %v181 = vld [vmem:[#allocation5 + $0x70] sm:$0xff]
    %v182 = vld [vmem:[#allocation5 + $0x78] sm:$0xff]
    %v183 = vld [vmem:[%s4] sm:$0x1]
    %v185 = vlaneseq
    %v186 = vshrl.u32 %v185, 7
    %v187 = vsub.s32 0, %v186
    %v188 = vrot.slane %v183, %v187
    %190 = vmatprep.subr.mxu0 0.0
    %191 = vmatpush1.msra.mxu0 %v167
    %192 = vmatprep.subr.mxu0 0.0
    %193 = vmatpush1.msra.mxu0 %v168
    %194 = vmatprep.subr.mxu0 0.0
    %195 = vmatpush1.msra.mxu0 %v169
    %196 = vmatprep.subr.mxu0 0.0
    %197 = vmatpush1.msra.mxu0 %v170
    %198 = vmatprep.subr.mxu0 0.0
    %199 = vmatpush1.msra.mxu0 %v171
    %200 = vmatprep.subr.mxu0 0.0
    %201 = vmatpush1.msra.mxu0 %v172
    %202 = vmatprep.subr.mxu0 0.0
    %203 = vmatpush1.msra.mxu0 %v173
    %204 = vmatprep.subr.mxu0 0.0
    %205 = vmatpush1.msra.mxu0 %v174
    %206 = vmatprep.subr.mxu0 0.0
    %207 = vmatpush1.msra.mxu0 %v175
    %208 = vmatprep.subr.mxu0 0.0
    %209 = vmatpush1.msra.mxu0 %v176
    %210 = vmatprep.subr.mxu0 0.0
    %211 = vmatpush1.msra.mxu0 %v177
    %212 = vmatprep.subr.mxu0 0.0
    %213 = vmatpush1.msra.mxu0 %v178
    %214 = vmatprep.subr.mxu0 0.0
    %215 = vmatpush1.msra.mxu0 %v179
    %216 = vmatprep.subr.mxu0 0.0
    %217 = vmatpush1.msra.mxu0 %v180
    %218 = vmatprep.subr.mxu0 0.0
    %219 = vmatpush1.msra.mxu0 %v181
    %220 = vmatprep.subr.mxu0 0.0
    %221 = vmatpush1.msra.mxu0 %v182
    %222 = vmatprep.subr.mxu0 0.0
    %223 = vmatpush1.msra.mxu0 0.0
    %224 = vmatprep.subr.mxu0 0.0
    %225 = vmatpush1.msra.mxu0 0.0
    %226 = vmatprep.subr.mxu0 0.0
    %227 = vmatpush1.msra.mxu0 0.0
    %228 = vmatprep.subr.mxu0 0.0
    %229 = vmatpush1.msra.mxu0 0.0
    %230 = vmatprep.subr.mxu0 0.0
    %231 = vmatpush1.msra.mxu0 0.0
    %232 = vmatprep.subr.mxu0 0.0
    %233 = vmatpush1.msra.mxu0 0.0
    %234 = vmatprep.subr.mxu0 0.0
    %235 = vmatpush1.msra.mxu0 0.0
    %236 = vmatprep.subr.mxu0 0.0
    %237 = vmatpush1.msra.mxu0 0.0
    %238 = vmatprep.subr.mxu0 0.0
    %239 = vmatpush1.msra.mxu0 0.0
    %240 = vmatprep.subr.mxu0 0.0
    %241 = vmatpush1.msra.mxu0 0.0
    %242 = vmatprep.subr.mxu0 0.0
    %243 = vmatpush1.msra.mxu0 0.0
    %244 = vmatprep.subr.mxu0 0.0
    %245 = vmatpush1.msra.mxu0 0.0
    %246 = vmatprep.subr.mxu0 0.0
    %247 = vmatpush1.msra.mxu0 0.0
    %248 = vmatprep.subr.mxu0 0.0
    %249 = vmatpush1.msra.mxu0 0.0
    %250 = vmatprep.subr.mxu0 0.0
    %251 = vmatpush1.msra.mxu0 0.0
    %252 = vmatprep.subr.mxu0 0.0
    %253 = vmatpush1.msra.mxu0 0.0
    %254 = vmatprep.mubr.f32.mxu0 0.0
    %255 = vmatmul.mubr.f32.gmra.mrb[0].mxu0 %v165
    %v256 = vpop.f32.mrb[0].mxu0
    %v257 = vadd.f32 %v188, %v256
    %v258 = vpop.f32.mrb[0].mxu0
    %259 = vmatprep.mubr.f32.mxu0 0.0
    %260 = vmatmul.mubr.f32.gmra.mrb[0].mxu0 %v166
    %v261 = vpop.f32.mrb[0].mxu0
    %v262 = vadd.f32 %v188, %v261
    %v263 = vpop.f32.mrb[0].mxu0
    %264 = vdwg.mxu0
    %265 = vst [vmem:[#allocation7] sm:$0xff] %v257
    %266 = vst [vmem:[#allocation7 + $0x8] sm:$0xff] %v262
    // Predicated region
    $region30: #{_mlp_forward.1} parent=1 // pred_check
      _
    $region31: #{_mlp_forward.1} parent=1 // pred_check_branch
      %268 = sbr.rel (0) target = $region33
    $region32: #{_mlp_forward.1} parent=1 // pred_region
      %s270 = ssub.s32 256, 256
      %271 = vsyncadd [#allocation4], %s270
      %s272 = sshll.u32 [#allocation7], 4
      %s273 = int_to_ptr.vmem [resolvable:$true] %s272
      %278 = dma.vmem_to_hbm [thread:$0]  %s273, 256, %s5, [#allocation4], 128, 128, 8
    $region33: #{_mlp_forward.1} parent=1 // pred_fallthru
      _
    // Predicated region
    $region34: #{_mlp_forward.1} parent=1 // pred_check
      _
    $region35: #{_mlp_forward.1} parent=1 // pred_check_branch
      %280 = sbr.rel (0) target = $region37
    $region36: #{_mlp_forward.1} parent=1 // pred_region
      %281 = dma.done [#allocation4], 256
    $region37: #{_mlp_forward.1} parent=1 // pred_fallthru
      _
    %282 = vsyncpa [#allocation3], 1
    %283 = vsyncpa [#allocation6], 1
    %284 = vsyncpa [#allocation4], 1

// kernel: _mlp_forward.1
$region0: #{_mlp_forward.1}
  #allocation0 [shape = 'u32[]', space=smem, size = 0x4, offset = 0x4, fixed_abs, tag = 'smem constant byte address 0x4 - core index']
  #allocation1 [shape = 'u32[144,128]{1,0:T(1,128)}', space=vmem, size = 0x12000, scoped, tag = 'internal scratch']
  %s0 = inlined_call_operand.vmem [shape: f32[16,128], index: 0, kind: input, shape index: {}]
  %s1 = inlined_call_operand.hbm [shape: f32[128,128], index: 1, kind: input, shape index: {}]
  %s2 = inlined_call_operand.vmem [shape: f32[1,128], index: 2, kind: input, shape index: {}]
  %s3 = inlined_call_operand.hbm [shape: f32[128,128], index: 3, kind: input, shape index: {}]
  %s4 = inlined_call_operand.vmem [shape: f32[1,128], index: 4, kind: input, shape index: {}]
  %s5 = inlined_call_operand.hbm [shape: f32[16,128], index: 5, kind: output, shape index: {}]
  %s6 = sld [smem:[#allocation0]]
  $region38: #{_mlp_forward.1} parent=0
    _
  %s8 = ssub.s32 1, %s6
  %s9 = scalar_select 0, %s8, %s6
  $region1: #{_mlp_forward.1} parent=0
    #allocation2 [shape = 'u8[65536]{0}', space=vmem, size = 0x10000, scoped, tag = 'input window, operand 1, single buffered']
    #allocation3 [shape = 's32[1]{0}', space=sflag, size = 0x4, scoped, tag = 'scoped memory for _mlp_forward.1']
    #allocation4 [shape = 's32[1]{0}', space=sflag, size = 0x4, scoped, tag = 'scoped memory for _mlp_forward.1']
    #allocation5 [shape = 'u8[65536]{0}', space=vmem, size = 0x10000, scoped, tag = 'input window, operand 3, single buffered']
    #allocation6 [shape = 's32[1]{0}', space=sflag, size = 0x4, scoped, tag = 'scoped memory for _mlp_forward.1']
    #allocation7 [shape = 'u8[8192]{0}', space=vmem, size = 0x2000, scoped, tag = 'output window, operand 0, single buffered']
    %10 = vsyncpa [#allocation3], 0
    %11 = vsyncpa [#allocation6], 0
    %12 = vsyncpa [#allocation4], 0
    // Predicated region
    $region2: #{_mlp_forward.1} parent=1 // pred_check
      _
    $region3: #{_mlp_forward.1} parent=1 // pred_check_branch
      %14 = sbr.rel (0) target = $region5
    $region4: #{_mlp_forward.1} parent=1 // pred_region
      _
    $region5: #{_mlp_forward.1} parent=1 // pred_fallthru
      _
    // Predicated region
    $region6: #{_mlp_forward.1} parent=1 // pred_check
      _
    $region7: #{_mlp_forward.1} parent=1 // pred_check_branch
      %16 = sbr.rel (0) target = $region9
    $region8: #{_mlp_forward.1} parent=1 // pred_region
      %s18 = ssub.s32 2048, 2048
      %19 = vsyncadd [#allocation3], %s18
      %s20 = sshll.u32 [#allocation2], 4
      %s21 = int_to_ptr.vmem [resolvable:$true] %s20
      %26 = dma.hbm_to_vmem [thread:$0]  %s1, 2048, %s21, [#allocation3], 128, 128, 8
    $region9: #{_mlp_forward.1} parent=1 // pred_fallthru
      _
    // Predicated region
    $region10: #{_mlp_forward.1} parent=1 // pred_check
      _
    $region11: #{_mlp_forward.1} parent=1 // pred_check_branch
      %28 = sbr.rel (0) target = $region13
    $region12: #{_mlp_forward.1} parent=1 // pred_region
      _
    $region13: #{_mlp_forward.1} parent=1 // pred_fallthru
      _
    // Predicated region
    $region14: #{_mlp_forward.1} parent=1 // pred_check
      _
    $region15: #{_mlp_forward.1} parent=1 // pred_check_branch
      %30 = sbr.rel (0) target = $region17
    $region16: #{_mlp_forward.1} parent=1 // pred_region
      %s32 = ssub.s32 2048, 2048
      %33 = vsyncadd [#allocation6], %s32
      %s34 = sshll.u32 [#allocation5], 4
      %s35 = int_to_ptr.vmem [resolvable:$true] %s34
      %40 = dma.hbm_to_vmem [thread:$0]  %s3, 2048, %s35, [#allocation6], 128, 128, 8
    $region17: #{_mlp_forward.1} parent=1 // pred_fallthru
      _
    // Predicated region
    $region18: #{_mlp_forward.1} parent=1 // pred_check
      _
    $region19: #{_mlp_forward.1} parent=1 // pred_check_branch
      %42 = sbr.rel (0) target = $region21
    $region20: #{_mlp_forward.1} parent=1 // pred_region
      _
    $region21: #{_mlp_forward.1} parent=1 // pred_fallthru
      _
    // Predicated region
    $region22: #{_mlp_forward.1} parent=1 // pred_check
      _
    $region23: #{_mlp_forward.1} parent=1 // pred_check_branch
      %44 = sbr.rel (0) target = $region25
    $region24: #{_mlp_forward.1} parent=1 // pred_region
      %45 = dma.done [#allocation3], 2048
    $region25: #{_mlp_forward.1} parent=1 // pred_fallthru
      _
    // Predicated region
    $region26: #{_mlp_forward.1} parent=1 // pred_check
      _
    $region27: #{_mlp_forward.1} parent=1 // pred_check_branch
      %47 = sbr.rel (0) target = $region29
    $region28: #{_mlp_forward.1} parent=1 // pred_region
      %48 = dma.done [#allocation6], 2048
    $region29: #{_mlp_forward.1} parent=1 // pred_fallthru
      _
    %v49 = vld [vmem:[%s0] sm:$0xff]
    %v50 = vld [vmem:[%s0 + $0x8] sm:$0xff]
    %v51 = vld [vmem:[#allocation2] sm:$0xff]
    %v52 = vld [vmem:[#allocation2 + $0x8] sm:$0xff]
    %v53 = vld [vmem:[#allocation2 + $0x10] sm:$0xff]
    %v54 = vld [vmem:[#allocation2 + $0x18] sm:$0xff]
    %v55 = vld [vmem:[#allocation2 + $0x20] sm:$0xff]
    %v56 = vld [vmem:[#allocation2 + $0x28] sm:$0xff]
    %v57 = vld [vmem:[#allocation2 + $0x30] sm:$0xff]
    %v58 = vld [vmem:[#allocation2 + $0x38] sm:$0xff]
    %v59 = vld [vmem:[#allocation2 + $0x40] sm:$0xff]
    %v60 = vld [vmem:[#allocation2 + $0x48] sm:$0xff]
    %v61 = vld [vmem:[#allocation2 + $0x50] sm:$0xff]
    %v62 = vld [vmem:[#allocation2 + $0x58] sm:$0xff]
    %v63 = vld [vmem:[#allocation2 + $0x60] sm:$0xff]
    %v64 = vld [vmem:[#allocation2 + $0x68] sm:$0xff]
    %v65 = vld [vmem:[#allocation2 + $0x70] sm:$0xff]
    %v66 = vld [vmem:[#allocation2 + $0x78] sm:$0xff]
    %v67 = vld [vmem:[%s2] sm:$0x1]
    %v69 = vlaneseq
    %v70 = vshrl.u32 %v69, 7
    %v71 = vsub.s32 0, %v70
    %v72 = vrot.slane %v67, %v71
    %74 = vmatprep.subr.mxu0 0.0
    %75 = vmatpush1.msra.mxu0 %v51
    %76 = vmatprep.subr.mxu0 0.0
    %77 = vmatpush1.msra.mxu0 %v52
    %78 = vmatprep.subr.mxu0 0.0
    %79 = vmatpush1.msra.mxu0 %v53
    %80 = vmatprep.subr.mxu0 0.0
    %81 = vmatpush1.msra.mxu0 %v54
    %82 = vmatprep.subr.mxu0 0.0
    %83 = vmatpush1.msra.mxu0 %v55
    %84 = vmatprep.subr.mxu0 0.0
    %85 = vmatpush1.msra.mxu0 %v56
    %86 = vmatprep.subr.mxu0 0.0
    %87 = vmatpush1.msra.mxu0 %v57
    %88 = vmatprep.subr.mxu0 0.0
    %89 = vmatpush1.msra.mxu0 %v58
    %90 = vmatprep.subr.mxu0 0.0
    %91 = vmatpush1.msra.mxu0 %v59
    %92 = vmatprep.subr.mxu0 0.0
    %93 = vmatpush1.msra.mxu0 %v60
    %94 = vmatprep.subr.mxu0 0.0
    %95 = vmatpush1.msra.mxu0 %v61
    %96 = vmatprep.subr.mxu0 0.0
    %97 = vmatpush1.msra.mxu0 %v62
    %98 = vmatprep.subr.mxu0 0.0
    %99 = vmatpush1.msra.mxu0 %v63
    %100 = vmatprep.subr.mxu0 0.0
    %101 = vmatpush1.msra.mxu0 %v64
    %102 = vmatprep.subr.mxu0 0.0
    %103 = vmatpush1.msra.mxu0 %v65
    %104 = vmatprep.subr.mxu0 0.0
    %105 = vmatpush1.msra.mxu0 %v66
    %106 = vmatprep.subr.mxu0 0.0
    %107 = vmatpush1.msra.mxu0 0.0
    %108 = vmatprep.subr.mxu0 0.0
    %109 = vmatpush1.msra.mxu0 0.0
    %110 = vmatprep.subr.mxu0 0.0
    %111 = vmatpush1.msra.mxu0 0.0
    %112 = vmatprep.subr.mxu0 0.0
    %113 = vmatpush1.msra.mxu0 0.0
    %114 = vmatprep.subr.mxu0 0.0
    %115 = vmatpush1.msra.mxu0 0.0
    %116 = vmatprep.subr.mxu0 0.0
    %117 = vmatpush1.msra.mxu0 0.0
    %118 = vmatprep.subr.mxu0 0.0
    %119 = vmatpush1.msra.mxu0 0.0
    %120 = vmatprep.subr.mxu0 0.0
    %121 = vmatpush1.msra.mxu0 0.0
    %122 = vmatprep.subr.mxu0 0.0
    %123 = vmatpush1.msra.mxu0 0.0
    %124 = vmatprep.subr.mxu0 0.0
    %125 = vmatpush1.msra.mxu0 0.0
    %126 = vmatprep.subr.mxu0 0.0
    %127 = vmatpush1.msra.mxu0 0.0
    %128 = vmatprep.subr.mxu0 0.0
    %129 = vmatpush1.msra.mxu0 0.0
    %130 = vmatprep.subr.mxu0 0.0
    %131 = vmatpush1.msra.mxu0 0.0
    %132 = vmatprep.subr.mxu0 0.0
    %133 = vmatpush1.msra.mxu0 0.0
    %134 = vmatprep.subr.mxu0 0.0
    %135 = vmatpush1.msra.mxu0 0.0
    %136 = vmatprep.subr.mxu0 0.0
    %137 = vmatpush1.msra.mxu0 0.0
    %138 = vmatprep.mubr.f32.mxu0 0.0
    %139 = vmatmul.mubr.f32.gmra.mrb[0].mxu0 %v49
    %v140 = vpop.f32.mrb[0].mxu0
    %v141 = vadd.f32 %v72, %v140
    %v142 = vpop.f32.mrb[0].mxu0
    %143 = vmatprep.mubr.f32.mxu0 0.0
    %144 = vmatmul.mubr.f32.gmra.mrb[0].mxu0 %v50
    %v145 = vpop.f32.mrb[0].mxu0
    %v146 = vadd.f32 %v72, %v145
    %v147 = vpop.f32.mrb[0].mxu0
    %148 = vdwg.mxu0
    %v149 = vmul.f32 %v141, %v141
    %v150 = vmul.f32 %v146, %v146
    %v151 = vmul.f32 %v141, %v149
    %v152 = vmul.f32 %v146, %v150
    %v153 = vmul.f32 %v151, 0.044715
    %v154 = vmul.f32 %v152, 0.044715
    %v155 = vadd.f32 %v141, %v153
    %v156 = vadd.f32 %v146, %v154
    %v157 = vmul.f32 %v155, 0.7978846
    %v158 = vmul.f32 %v156, 0.7978846
    %v159 = vtanh.pop %v157
    %v160 = vtanh.pop %v158
    %v161 = vadd.f32 %v159, 1.0
    %v162 = vadd.f32 %v160, 1.0
    %v163 = vmul.f32 %v161, 0.5
    %v164 = vmul.f32 %v162, 0.5
    %v165 = vmul.f32 %v141, %v163
    %v166 = vmul.f32 %v146, %v164
    %v167 = vld [vmem:[#allocation5] sm:$0xff]
    %v168 = vld [vmem:[#allocation5 + $0x8] sm:$0xff]
    %v169 = vld [vmem:[#allocation5 + $0x10] sm:$0xff]
    %v170 = vld [vmem:[#allocation5 + $0x18] sm:$0xff]
    %v171 = vld [vmem:[#allocation5 + $0x20] sm:$0xff]
    %v172 = vld [vmem:[#allocation5 + $0x28] sm:$0xff]
    %v173 = vld [vmem:[#allocation5 + $0x30] sm:$0xff]
    %v174 = vld [vmem:[#allocation5 + $0x38] sm:$0xff]
    %v175 = vld [vmem:[#allocation5 + $0x40] sm:$0xff]
    %v176 = vld [vmem:[#allocation5 + $0x48] sm:$0xff]
    %v177 = vld [vmem:[#allocation5 + $0x50] sm:$0xff]
    %v178 = vld [vmem:[#allocation5 + $0x58] sm:$0xff]
    %v179 = vld [vmem:[#allocation5 + $0x60] sm:$0xff]
    %v180 = vld [vmem:[#allocation5 + $0x68] sm:$0xff]
    %v181 = vld [vmem:[#allocation5 + $0x70] sm:$0xff]
    %v182 = vld [vmem:[#allocation5 + $0x78] sm:$0xff]
    %v183 = vld [vmem:[%s4] sm:$0x1]
    %v185 = vlaneseq
    %v186 = vshrl.u32 %v185, 7
    %v187 = vsub.s32 0, %v186
    %v188 = vrot.slane %v183, %v187
    %190 = vmatprep.subr.mxu0 0.0
    %191 = vmatpush1.msra.mxu0 %v167
    %192 = vmatprep.subr.mxu0 0.0
    %193 = vmatpush1.msra.mxu0 %v168
    %194 = vmatprep.subr.mxu0 0.0
    %195 = vmatpush1.msra.mxu0 %v169
    %196 = vmatprep.subr.mxu0 0.0
    %197 = vmatpush1.msra.mxu0 %v170
    %198 = vmatprep.subr.mxu0 0.0
    %199 = vmatpush1.msra.mxu0 %v171
    %200 = vmatprep.subr.mxu0 0.0
    %201 = vmatpush1.msra.mxu0 %v172
    %202 = vmatprep.subr.mxu0 0.0
    %203 = vmatpush1.msra.mxu0 %v173
    %204 = vmatprep.subr.mxu0 0.0
    %205 = vmatpush1.msra.mxu0 %v174
    %206 = vmatprep.subr.mxu0 0.0
    %207 = vmatpush1.msra.mxu0 %v175
    %208 = vmatprep.subr.mxu0 0.0
    %209 = vmatpush1.msra.mxu0 %v176
    %210 = vmatprep.subr.mxu0 0.0
    %211 = vmatpush1.msra.mxu0 %v177
    %212 = vmatprep.subr.mxu0 0.0
    %213 = vmatpush1.msra.mxu0 %v178
    %214 = vmatprep.subr.mxu0 0.0
    %215 = vmatpush1.msra.mxu0 %v179
    %216 = vmatprep.subr.mxu0 0.0
    %217 = vmatpush1.msra.mxu0 %v180
    %218 = vmatprep.subr.mxu0 0.0
    %219 = vmatpush1.msra.mxu0 %v181
    %220 = vmatprep.subr.mxu0 0.0
    %221 = vmatpush1.msra.mxu0 %v182
    %222 = vmatprep.subr.mxu0 0.0
    %223 = vmatpush1.msra.mxu0 0.0
    %224 = vmatprep.subr.mxu0 0.0
    %225 = vmatpush1.msra.mxu0 0.0
    %226 = vmatprep.subr.mxu0 0.0
    %227 = vmatpush1.msra.mxu0 0.0
    %228 = vmatprep.subr.mxu0 0.0
    %229 = vmatpush1.msra.mxu0 0.0
    %230 = vmatprep.subr.mxu0 0.0
    %231 = vmatpush1.msra.mxu0 0.0
    %232 = vmatprep.subr.mxu0 0.0
    %233 = vmatpush1.msra.mxu0 0.0
    %234 = vmatprep.subr.mxu0 0.0
    %235 = vmatpush1.msra.mxu0 0.0
    %236 = vmatprep.subr.mxu0 0.0
    %237 = vmatpush1.msra.mxu0 0.0
    %238 = vmatprep.subr.mxu0 0.0
    %239 = vmatpush1.msra.mxu0 0.0
    %240 = vmatprep.subr.mxu0 0.0
    %241 = vmatpush1.msra.mxu0 0.0
    %242 = vmatprep.subr.mxu0 0.0
    %243 = vmatpush1.msra.mxu0 0.0
    %244 = vmatprep.subr.mxu0 0.0
    %245 = vmatpush1.msra.mxu0 0.0
    %246 = vmatprep.subr.mxu0 0.0
    %247 = vmatpush1.msra.mxu0 0.0
    %248 = vmatprep.subr.mxu0 0.0
    %249 = vmatpush1.msra.mxu0 0.0
    %250 = vmatprep.subr.mxu0 0.0
    %251 = vmatpush1.msra.mxu0 0.0
    %252 = vmatprep.subr.mxu0 0.0
    %253 = vmatpush1.msra.mxu0 0.0
    %254 = vmatprep.mubr.f32.mxu0 0.0
    %255 = vmatmul.mubr.f32.gmra.mrb[0].mxu0 %v165
    %v256 = vpop.f32.mrb[0].mxu0
    %v257 = vadd.f32 %v188, %v256
    %v258 = vpop.f32.mrb[0].mxu0
    %259 = vmatprep.mubr.f32.mxu0 0.0
    %260 = vmatmul.mubr.f32.gmra.mrb[0].mxu0 %v166
    %v261 = vpop.f32.mrb[0].mxu0
    %v262 = vadd.f32 %v188, %v261
    %v263 = vpop.f32.mrb[0].mxu0
    %264 = vdwg.mxu0
    %265 = vst [vmem:[#allocation7] sm:$0xff] %v257
    %266 = vst [vmem:[#allocation7 + $0x8] sm:$0xff] %v262
    // Predicated region
    $region30: #{_mlp_forward.1} parent=1 // pred_check
      _
    $region31: #{_mlp_forward.1} parent=1 // pred_check_branch
      %268 = sbr.rel (0) target = $region33
    $region32: #{_mlp_forward.1} parent=1 // pred_region
      %s270 = ssub.s32 256, 256
      %271 = vsyncadd [#allocation4], %s270
      %s272 = sshll.u32 [#allocation7], 4
      %s273 = int_to_ptr.vmem [resolvable:$true] %s272
      %278 = dma.vmem_to_hbm [thread:$0]  %s273, 256, %s5, [#allocation4], 128, 128, 8
    $region33: #{_mlp_forward.1} parent=1 // pred_fallthru
      _
    // Predicated region
    $region34: #{_mlp_forward.1} parent=1 // pred_check
      _
    $region35: #{_mlp_forward.1} parent=1 // pred_check_branch
      %280 = sbr.rel (0) target = $region37
    $region36: #{_mlp_forward.1} parent=1 // pred_region
      %281 = dma.done [#allocation4], 256
    $region37: #{_mlp_forward.1} parent=1 // pred_fallthru
      _
    %282 = vsyncpa [#allocation3], 1
    %283 = vsyncpa [#allocation6], 1
    %284 = vsyncpa [#allocation4], 1

</llo_original>
